<compile_context>
chip_gen: v5e
topology: v5e:2x2
jax: 0.10.0
libtpu: 0.0.40
codegen_flags: <defaults>
</compile_context>

<pallas_src>
import functools

import jax
import jax.numpy as jnp
from jax.experimental import pallas as pl
from jax.experimental.pallas import tpu as pltpu

H_PAD = 64  # hidden width 50, zero-padded to a sublane-aligned 64


def _pinn_kernel(x_ref, w1c0_ref, w1c1_ref, b1_ref, w2t_ref, b2_ref,
                 w3t_ref, b3_ref, o_ref):
    # Feature-major: batch sits on the 128-lane axis in every tensor below.
    x0 = x_ref[0:1, :]                     # (1, TM)  input feature 0
    x1 = x_ref[1:2, :]                     # (1, TM)  input feature 1

    # Layer 1 (K=2 contraction) as two VPU broadcast-FMAs -- no MXU pass.
    #   z1[h, n] = W1[h,0]*x0[n] + W1[h,1]*x1[n] + b1[h]
    z1 = w1c0_ref[...] * x0 + w1c1_ref[...] * x1 + b1_ref[...]   # (H, TM)
    h1 = jnp.tanh(z1)

    # Layer 2 on the MXU: (H, H) @ (H, TM) -> (H, TM)
    z2 = jnp.dot(w2t_ref[...], h1,
                 preferred_element_type=jnp.float32) + b2_ref[...]
    h2 = jnp.tanh(z2)

    # Layer 3: (1, H) @ (H, TM) -> lane-dense (1, TM) output tile.
    o_ref[...] = (
        jnp.dot(w3t_ref[...], h2, preferred_element_type=jnp.float32)
        + b3_ref[...]
    )


def _round_up(x, m):
    return (x + m - 1) // m * m


@functools.partial(jax.jit, static_argnames=("block_m",))
def pinn_forward(xt, w1, b1, w2, b2, w3, b3, *, block_m=None):
    """Fused MLP forward: tanh(tanh(x@W1+b1)@W2+b2)@W3+b3.

    xt: (N, 2) float32.  Weights are stored (in_features, out_features),
    biases are 1-D (PyTorch-equivalent math).  Returns (N, 1) float32.
    """
    n, in_dim = xt.shape
    assert in_dim == 2
    h = w1.shape[1]          # 50
    out_dim = w3.shape[1]    # 1
    assert h <= H_PAD and out_dim == 1

    # Batch tile lives on the lane axis => must be a multiple of 128.
    # Prefer 512 (multiple of 256 for whole MXU passes on v6e/v7x); shrink for
    # small batches so the grid keeps >=2 steps (pipelining, both v7x TCs)
    # whenever the batch allows it.
    if block_m is None:
        block_m = 512
        while block_m > 128 and n <= block_m:
            block_m //= 2
    assert block_m % 128 == 0, "block_m must be a multiple of 128 (lane axis)"

    n_pad = _round_up(n, block_m)
    grid = (n_pad // block_m,)

    # ---- one-time layout plumbing (transposed + zero-padded), outside kernel ----
    # x: (N, 2) -> (2, N_pad): batch on the lane axis, contiguous per tile.
    x_t = jnp.zeros((in_dim, n_pad), jnp.float32).at[:, :n].set(xt.T)

    # Weights as W^T (out_features, in_features), hidden dim padded 50 -> 64.
    w1t = jnp.zeros((H_PAD, in_dim), jnp.float32).at[:h, :].set(w1.T)
    w1c0 = w1t[:, 0:1]                                         # (H_PAD, 1)
    w1c1 = w1t[:, 1:2]                                         # (H_PAD, 1)
    b1c = jnp.zeros((H_PAD, 1), jnp.float32).at[:h, 0].set(b1)
    w2t = jnp.zeros((H_PAD, H_PAD), jnp.float32).at[:h, :h].set(w2.T)
    b2c = jnp.zeros((H_PAD, 1), jnp.float32).at[:h, 0].set(b2)
    w3t = jnp.zeros((out_dim, H_PAD), jnp.float32).at[:, :h].set(w3.T)
    b3c = b3.reshape(1, 1).astype(jnp.float32)

    out_t = pl.pallas_call(
        _pinn_kernel,
        out_shape=jax.ShapeDtypeStruct((1, n_pad), jnp.float32),
        grid_spec=pltpu.PrefetchScalarGridSpec(
            num_scalar_prefetch=0,
            grid=grid,
            in_specs=[
                pl.BlockSpec((in_dim, block_m), lambda i: (0, i)),  # x tile
                pl.BlockSpec((H_PAD, 1), lambda i: (0, 0)),         # W1 col 0
                pl.BlockSpec((H_PAD, 1), lambda i: (0, 0)),         # W1 col 1
                pl.BlockSpec((H_PAD, 1), lambda i: (0, 0)),         # b1
                pl.BlockSpec((H_PAD, H_PAD), lambda i: (0, 0)),     # W2^T
                pl.BlockSpec((H_PAD, 1), lambda i: (0, 0)),         # b2
                pl.BlockSpec((1, H_PAD), lambda i: (0, 0)),         # W3^T
                pl.BlockSpec((1, 1), lambda i: (0, 0)),             # b3
            ],
            out_specs=pl.BlockSpec((1, block_m), lambda i: (0, i)),  # lane-dense
        ),
        compiler_params=pltpu.CompilerParams(
            dimension_semantics=("parallel",)
        ),
    )(x_t, w1c0, w1c1, b1c, w2t, b2c, w3t, b3c)

    # (1, N_pad) -> (N, 1); single-row reshape/slice, pure layout plumbing.
    return out_t[:, :n].reshape(n, out_dim)


def init_pinn_params(key):
    """Deterministic init mimicking PyTorch Linear default U[-1/sqrt(fan_in), +]."""
    k1, k2, k3, k4, k5, k6 = jax.random.split(key, 6)

    def uniform(k, shape, fan_in):
        bound = 1.0 / jnp.sqrt(fan_in)
        return jax.random.uniform(
            k, shape, dtype=jnp.float32, minval=-bound, maxval=bound
        )

    # Stored as (in_features, out_features).
    w1 = uniform(k1, (2, 50), 2.0)
    b1 = uniform(k2, (50,), 2.0)
    w2 = uniform(k3, (50, 50), 50.0)
    b2 = uniform(k4, (50,), 50.0)
    w3 = uniform(k5, (50, 1), 50.0)
    b3 = uniform(k6, (1,), 50.0)
    return w1, b1, w2, b2, w3, b3


def pinn_reference(xt, w1, b1, w2, b2, w3, b3):
    h1 = jnp.tanh(xt @ w1 + b1)
    h2 = jnp.tanh(h1 @ w2 + b2)
    return h2 @ w3 + b3


if __name__ == "__main__":
    key = jax.random.PRNGKey(0)
    pkey, xkey = jax.random.split(key)

    w1, b1, w2, b2, w3, b3 = init_pinn_params(pkey)

    # Small collocation batch of (x, t) points.  n=300 exercises the zero
    # padding (300 -> 512) and a 2-step grid with the 256-row fallback tile.
    n = 300
    xt = jax.random.uniform(xkey, (n, 2), dtype=jnp.float32)

    out = pinn_forward(xt, w1, b1, w2, b2, w3, b3)
    out = jax.block_until_ready(out)

    ref = pinn_reference(xt, w1, b1, w2, b2, w3, b3)
    assert out.shape == (n, 1), out.shape
    assert jnp.allclose(out, ref, atol=1e-4, rtol=1e-4), (
        "mismatch vs reference, max abs err = "
        + str(float(jnp.max(jnp.abs(out - ref))))
    )

    print("KERNEL_OK")
</pallas_src>

<mosaic_0001>
module attributes {stable_mosaic.version = 11 : i64} {
  func.func @_pinn_kernel(%arg0: i32, %arg1: memref<2x256xf32, #tpu.memory_space<vmem>>, %arg2: memref<64x1xf32, #tpu.memory_space<vmem>>, %arg3: memref<64x1xf32, #tpu.memory_space<vmem>>, %arg4: memref<64x1xf32, #tpu.memory_space<vmem>>, %arg5: memref<64x64xf32, #tpu.memory_space<vmem>>, %arg6: memref<64x1xf32, #tpu.memory_space<vmem>>, %arg7: memref<1x64xf32, #tpu.memory_space<vmem>>, %arg8: memref<1x1xf32, #tpu.memory_space<vmem>>, %arg9: memref<1x256xf32, #tpu.memory_space<vmem>>) attributes {dimension_semantics = [#tpu.dimension_semantics<parallel>], iteration_bounds = array<i64: 2>, scalar_prefetch = 0 : i64, scratch_operands = 0 : i64, tpu.core_type = #tpu.core_type<tc>, window_params = [{transform_indices = @transform_0, window_bounds = array<i64: 2, 256>}, {pipeline_mode = #tpu.pipeline_mode<synchronous>, transform_indices = @transform_1, window_bounds = array<i64: 64, 1>}, {pipeline_mode = #tpu.pipeline_mode<synchronous>, transform_indices = @transform_2, window_bounds = array<i64: 64, 1>}, {pipeline_mode = #tpu.pipeline_mode<synchronous>, transform_indices = @transform_3, window_bounds = array<i64: 64, 1>}, {pipeline_mode = #tpu.pipeline_mode<synchronous>, transform_indices = @transform_4, window_bounds = array<i64: 64, 64>}, {pipeline_mode = #tpu.pipeline_mode<synchronous>, transform_indices = @transform_5, window_bounds = array<i64: 64, 1>}, {pipeline_mode = #tpu.pipeline_mode<synchronous>, transform_indices = @transform_6, window_bounds = array<i64: 1, 64>}, {pipeline_mode = #tpu.pipeline_mode<synchronous>, transform_indices = @transform_7, window_bounds = array<i64: 1, 1>}, {transform_indices = @transform_8, window_bounds = array<i64: 1, 256>}]} {
    %c0 = arith.constant 0 : index
    %c0_0 = arith.constant 0 : index
    %0 = vector.load %arg1[%c0, %c0_0] : memref<2x256xf32, #tpu.memory_space<vmem>>, vector<1x256xf32>
    %c1 = arith.constant 1 : index
    %c0_1 = arith.constant 0 : index
    %1 = vector.load %arg1[%c1, %c0_1] : memref<2x256xf32, #tpu.memory_space<vmem>>, vector<1x256xf32>
    %c0_2 = arith.constant 0 : index
    %c0_3 = arith.constant 0 : index
    %2 = vector.load %arg2[%c0_2, %c0_3] : memref<64x1xf32, #tpu.memory_space<vmem>>, vector<64x1xf32>
    %3 = vector.broadcast %2 : vector<64x1xf32> to vector<64x256xf32>
    %4 = vector.broadcast %0 : vector<1x256xf32> to vector<64x256xf32>
    %5 = arith.mulf %3, %4 : vector<64x256xf32>
    %c0_4 = arith.constant 0 : index
    %c0_5 = arith.constant 0 : index
    %6 = vector.load %arg3[%c0_4, %c0_5] : memref<64x1xf32, #tpu.memory_space<vmem>>, vector<64x1xf32>
    %7 = vector.broadcast %6 : vector<64x1xf32> to vector<64x256xf32>
    %8 = vector.broadcast %1 : vector<1x256xf32> to vector<64x256xf32>
    %9 = arith.mulf %7, %8 : vector<64x256xf32>
    %10 = arith.addf %5, %9 : vector<64x256xf32>
    %c0_6 = arith.constant 0 : index
    %c0_7 = arith.constant 0 : index
    %11 = vector.load %arg4[%c0_6, %c0_7] : memref<64x1xf32, #tpu.memory_space<vmem>>, vector<64x1xf32>
    %12 = vector.broadcast %11 : vector<64x1xf32> to vector<64x256xf32>
    %13 = arith.addf %10, %12 : vector<64x256xf32>
    %14 = math.tanh %13 : vector<64x256xf32>
    %c0_8 = arith.constant 0 : index
    %c0_9 = arith.constant 0 : index
    %15 = vector.load %arg5[%c0_8, %c0_9] : memref<64x64xf32, #tpu.memory_space<vmem>>, vector<64x64xf32>
    %cst = arith.constant dense<0.000000e+00> : vector<64x256xf32>
    %16 = tpu.matmul %15, %14, %cst {dimension_numbers = #tpu.dot_dimension_numbers<[1], [0], [0], [1], [0, 0, 1, 1], [], []>} : vector<64x64xf32>, vector<64x256xf32>, vector<64x256xf32> -> vector<64x256xf32>
    %c0_10 = arith.constant 0 : index
    %c0_11 = arith.constant 0 : index
    %17 = vector.load %arg6[%c0_10, %c0_11] : memref<64x1xf32, #tpu.memory_space<vmem>>, vector<64x1xf32>
    %18 = vector.broadcast %17 : vector<64x1xf32> to vector<64x256xf32>
    %19 = arith.addf %16, %18 : vector<64x256xf32>
    %20 = math.tanh %19 : vector<64x256xf32>
    %c0_12 = arith.constant 0 : index
    %c0_13 = arith.constant 0 : index
    %21 = vector.load %arg7[%c0_12, %c0_13] : memref<1x64xf32, #tpu.memory_space<vmem>>, vector<1x64xf32>
    %cst_14 = arith.constant dense<0.000000e+00> : vector<1x256xf32>
    %22 = tpu.matmul %21, %20, %cst_14 {dimension_numbers = #tpu.dot_dimension_numbers<[1], [0], [0], [1], [0, 0, 1, 1], [], []>} : vector<1x64xf32>, vector<64x256xf32>, vector<1x256xf32> -> vector<1x256xf32>
    %c0_15 = arith.constant 0 : index
    %c0_16 = arith.constant 0 : index
    %23 = vector.load %arg8[%c0_15, %c0_16] : memref<1x1xf32, #tpu.memory_space<vmem>>, vector<1x1xf32>
    %24 = vector.broadcast %23 : vector<1x1xf32> to vector<1x256xf32>
    %25 = arith.addf %22, %24 : vector<1x256xf32>
    %c0_17 = arith.constant 0 : index
    %c0_18 = arith.constant 0 : index
    %26 = vector.load %arg9[%c0_17, %c0_18] : memref<1x256xf32, #tpu.memory_space<vmem>>, vector<1x256xf32>
    tpu.vector_store %arg9[%c0_17, %c0_18], %25 {strides = array<i32>} : memref<1x256xf32, #tpu.memory_space<vmem>>, vector<1x256xf32>,
    return
  }
  func.func @transform_0(%arg0: i32) -> (i32, i32) {
    %c0_i32 = arith.constant 0 : i32
    %c0_i32_0 = arith.constant 0 : i32
    return %c0_i32, %arg0 : i32, i32
  }
  func.func @transform_1(%arg0: i32) -> (i32, i32) {
    %c0_i32 = arith.constant 0 : i32
    %c0_i32_0 = arith.constant 0 : i32
    %c0_i32_1 = arith.constant 0 : i32
    return %c0_i32, %c0_i32_0 : i32, i32
  }
  func.func @transform_2(%arg0: i32) -> (i32, i32) {
    %c0_i32 = arith.constant 0 : i32
    %c0_i32_0 = arith.constant 0 : i32
    %c0_i32_1 = arith.constant 0 : i32
    return %c0_i32, %c0_i32_0 : i32, i32
  }
  func.func @transform_3(%arg0: i32) -> (i32, i32) {
    %c0_i32 = arith.constant 0 : i32
    %c0_i32_0 = arith.constant 0 : i32
    %c0_i32_1 = arith.constant 0 : i32
    return %c0_i32, %c0_i32_0 : i32, i32
  }
  func.func @transform_4(%arg0: i32) -> (i32, i32) {
    %c0_i32 = arith.constant 0 : i32
    %c0_i32_0 = arith.constant 0 : i32
    %c0_i32_1 = arith.constant 0 : i32
    return %c0_i32, %c0_i32_0 : i32, i32
  }
  func.func @transform_5(%arg0: i32) -> (i32, i32) {
    %c0_i32 = arith.constant 0 : i32
    %c0_i32_0 = arith.constant 0 : i32
    %c0_i32_1 = arith.constant 0 : i32
    return %c0_i32, %c0_i32_0 : i32, i32
  }
  func.func @transform_6(%arg0: i32) -> (i32, i32) {
    %c0_i32 = arith.constant 0 : i32
    %c0_i32_0 = arith.constant 0 : i32
    %c0_i32_1 = arith.constant 0 : i32
    return %c0_i32, %c0_i32_0 : i32, i32
  }
  func.func @transform_7(%arg0: i32) -> (i32, i32) {
    %c0_i32 = arith.constant 0 : i32
    %c0_i32_0 = arith.constant 0 : i32
    %c0_i32_1 = arith.constant 0 : i32
    return %c0_i32, %c0_i32_0 : i32, i32
  }
  func.func @transform_8(%arg0: i32) -> (i32, i32) {
    %c0_i32 = arith.constant 0 : i32
    %c0_i32_0 = arith.constant 0 : i32
    return %c0_i32, %arg0 : i32, i32
  }
}

</mosaic_0001>

<llo_original>
// kernel: pinn_forward.1
$region0: #{pinn_forward.1}
  #allocation0 [shape = 'u32[]', space=smem, size = 0x4, offset = 0x4, fixed_abs, tag = 'smem constant byte address 0x4 - core index']
  #allocation1 [shape = 'u32[72,128]{1,0:T(1,128)}', space=vmem, size = 0x9000, scoped, tag = 'internal scratch']
  #allocation2 [shape = 'f32[1,1]{1,0:T(1,128)S(1)}', space=vmem, size = 0x200, scoped, tag = 'scoped memory for pinn_forward.1']
  %s0 = inlined_call_operand.vmem [shape: f32[2,512], index: 0, kind: input, shape index: {}]
  %s1 = inlined_call_operand.vmem [shape: f32[64,1], index: 1, kind: input, shape index: {}]
  %s2 = inlined_call_operand.vmem [shape: f32[64,1], index: 2, kind: input, shape index: {}]
  %s3 = inlined_call_operand.vmem [shape: f32[64,1], index: 3, kind: input, shape index: {}]
  %s4 = inlined_call_operand.vmem [shape: f32[64,64], index: 4, kind: input, shape index: {}]
  %s5 = inlined_call_operand.vmem [shape: f32[64,1], index: 5, kind: input, shape index: {}]
  %s6 = inlined_call_operand.vmem [shape: f32[1,64], index: 6, kind: input, shape index: {}]
  %s7 = inlined_call_operand.<no memory space> [shape: f32[1,1], index: 7, kind: input, shape index: {}]
  %s8 = inlined_call_operand.vmem [shape: f32[1,512], index: 8, kind: output, shape index: {}]
  %s9 = sld [smem:[#allocation0]]
  $region65: #{pinn_forward.1} parent=0
    _
  %s11 = ssub.s32 1, %s9
  %s12 = scalar_select 0, %s11, %s9
  %v13 = vstv %s7
  %14 = vst [vmem:[#allocation2] sm:$0x1] %v13
  loop: start=0, step=1, limit=4
  $region2: #{pinn_forward.1} parent=0 // loop_pre_header
    _
  $region3: #{pinn_forward.1} parent=0 // loop_header
    %s16 = sphi 0, %s20
    %p17 = scmp.ge.s32.totalorder %s16, 4
    %s26 = sphi 0, %s28
    %s29 = sphi 0, %s26
    %s30 = sphi 0, %s29
    %s46 = sphi 0, %s30
    %s50 = sphi 0, %s50
    %s52 = sphi 0, %s50
    %s53 = sphi 0, %s52
    %s67 = sphi 0, %s53
    %s71 = sphi 0, %s71
    %s73 = sphi 0, %s71
    %s74 = sphi 0, %s73
    %s88 = sphi 0, %s74
    %s92 = sphi 0, %s92
    %s94 = sphi 0, %s92
    %s95 = sphi 0, %s94
    %s109 = sphi 0, %s95
    %s113 = sphi 0, %s113
    %s115 = sphi 0, %s113
    %s116 = sphi 0, %s115
    %s130 = sphi 0, %s116
    %s134 = sphi 0, %s134
    %s136 = sphi 0, %s134
    %s137 = sphi 0, %s136
    %s151 = sphi 0, %s137
    %s155 = sphi 0, %s155
    %s157 = sphi 0, %s155
    %s158 = sphi 0, %s157
    %s172 = sphi 0, %s158
    %s176 = sphi 0, %s176
    %s178 = sphi 0, %s176
    %s179 = sphi 0, %s178
    %s193 = sphi 0, %s179
    %s199 = sphi 0, %s201
    %s202 = sphi 0, %s199
    %s203 = sphi 0, %s202
    %s219 = sphi 0, %s203
  $region4: #{pinn_forward.1} parent=0 // loop_header_branch
    %19 = sbr.rel (%p17) target = $region8
  $region5: #{pinn_forward.1} parent=0 // loop_body
    %s21 = ssub.s32 %s16, 1
    %s22 = ssub.s32 %s16, 2
    %s23 = sadd.s32 %s16, 1
    %s24 = ssub.s32 %s16, %s23
    %p25 = scmp.eq.s32.totalorder %s24, 0
    %s27 = sadd.s32 %s26, 1
    %s28 = scalar_select %p25, %s26, %s27
    %p31 = pneg %p25
    %p32 = scmp.eq.s32.totalorder %s16, 1
    %p33 = por %p31, %p32
    %p34 = scmp.ne.s32.totalorder %s26, %s29
    %p35 = scmp.eq.s32.totalorder %s16, 0
    %p36 = por %p34, %p35
    %p37 = scmp.ne.s32.totalorder %s26, %s29
    %p38 = scmp.eq.s32.totalorder %s21, 1
    %p39 = por %p37, %p38
    %p40 = scmp.ne.s32.totalorder %s29, %s30
    %p41 = scmp.eq.s32.totalorder %s21, 0
    %p42 = por %p40, %p41
    %p43 = scmp.ne.s32.totalorder %s29, %s30
    %p44 = scmp.eq.s32.totalorder %s22, 1
    %p45 = por %p43, %p44
    %p47 = scmp.ne.s32.totalorder %s30, %s46
    %p48 = scmp.eq.s32.totalorder %s22, 0
    %p49 = por %p47, %p48
    %s51 = sadd.s32 %s50, 1
    %p54 = scmp.eq.s32.totalorder %s16, 1
    %p55 = scmp.ne.s32.totalorder %s50, %s52
    %p56 = scmp.eq.s32.totalorder %s16, 0
    %p57 = por %p55, %p56
    %p58 = scmp.ne.s32.totalorder %s50, %s52
    %p59 = scmp.eq.s32.totalorder %s21, 1
    %p60 = por %p58, %p59
    %p61 = scmp.ne.s32.totalorder %s52, %s53
    %p62 = scmp.eq.s32.totalorder %s21, 0
    %p63 = por %p61, %p62
    %p64 = scmp.ne.s32.totalorder %s52, %s53
    %p65 = scmp.eq.s32.totalorder %s22, 1
    %p66 = por %p64, %p65
    %p68 = scmp.ne.s32.totalorder %s53, %s67
    %p69 = scmp.eq.s32.totalorder %s22, 0
    %p70 = por %p68, %p69
    %s72 = sadd.s32 %s71, 1
    %p75 = scmp.eq.s32.totalorder %s16, 1
    %p76 = scmp.ne.s32.totalorder %s71, %s73
    %p77 = scmp.eq.s32.totalorder %s16, 0
    %p78 = por %p76, %p77
    %p79 = scmp.ne.s32.totalorder %s71, %s73
    %p80 = scmp.eq.s32.totalorder %s21, 1
    %p81 = por %p79, %p80
    %p82 = scmp.ne.s32.totalorder %s73, %s74
    %p83 = scmp.eq.s32.totalorder %s21, 0
    %p84 = por %p82, %p83
    %p85 = scmp.ne.s32.totalorder %s73, %s74
    %p86 = scmp.eq.s32.totalorder %s22, 1
    %p87 = por %p85, %p86
    %p89 = scmp.ne.s32.totalorder %s74, %s88
    %p90 = scmp.eq.s32.totalorder %s22, 0
    %p91 = por %p89, %p90
    %s93 = sadd.s32 %s92, 1
    %p96 = scmp.eq.s32.totalorder %s16, 1
    %p97 = scmp.ne.s32.totalorder %s92, %s94
    %p98 = scmp.eq.s32.totalorder %s16, 0
    %p99 = por %p97, %p98
    %p100 = scmp.ne.s32.totalorder %s92, %s94
    %p101 = scmp.eq.s32.totalorder %s21, 1
    %p102 = por %p100, %p101
    %p103 = scmp.ne.s32.totalorder %s94, %s95
    %p104 = scmp.eq.s32.totalorder %s21, 0
    %p105 = por %p103, %p104
    %p106 = scmp.ne.s32.totalorder %s94, %s95
    %p107 = scmp.eq.s32.totalorder %s22, 1
    %p108 = por %p106, %p107
    %p110 = scmp.ne.s32.totalorder %s95, %s109
    %p111 = scmp.eq.s32.totalorder %s22, 0
    %p112 = por %p110, %p111
    %s114 = sadd.s32 %s113, 1
    %p117 = scmp.eq.s32.totalorder %s16, 1
    %p118 = scmp.ne.s32.totalorder %s113, %s115
    %p119 = scmp.eq.s32.totalorder %s16, 0
    %p120 = por %p118, %p119
    %p121 = scmp.ne.s32.totalorder %s113, %s115
    %p122 = scmp.eq.s32.totalorder %s21, 1
    %p123 = por %p121, %p122
    %p124 = scmp.ne.s32.totalorder %s115, %s116
    %p125 = scmp.eq.s32.totalorder %s21, 0
    %p126 = por %p124, %p125
    %p127 = scmp.ne.s32.totalorder %s115, %s116
    %p128 = scmp.eq.s32.totalorder %s22, 1
    %p129 = por %p127, %p128
    %p131 = scmp.ne.s32.totalorder %s116, %s130
    %p132 = scmp.eq.s32.totalorder %s22, 0
    %p133 = por %p131, %p132
    %s135 = sadd.s32 %s134, 1
    %p138 = scmp.eq.s32.totalorder %s16, 1
    %p139 = scmp.ne.s32.totalorder %s134, %s136
    %p140 = scmp.eq.s32.totalorder %s16, 0
    %p141 = por %p139, %p140
    %p142 = scmp.ne.s32.totalorder %s134, %s136
    %p143 = scmp.eq.s32.totalorder %s21, 1
    %p144 = por %p142, %p143
    %p145 = scmp.ne.s32.totalorder %s136, %s137
    %p146 = scmp.eq.s32.totalorder %s21, 0
    %p147 = por %p145, %p146
    %p148 = scmp.ne.s32.totalorder %s136, %s137
    %p149 = scmp.eq.s32.totalorder %s22, 1
    %p150 = por %p148, %p149
    %p152 = scmp.ne.s32.totalorder %s137, %s151
    %p153 = scmp.eq.s32.totalorder %s22, 0
    %p154 = por %p152, %p153
    %s156 = sadd.s32 %s155, 1
    %p159 = scmp.eq.s32.totalorder %s16, 1
    %p160 = scmp.ne.s32.totalorder %s155, %s157
    %p161 = scmp.eq.s32.totalorder %s16, 0
    %p162 = por %p160, %p161
    %p163 = scmp.ne.s32.totalorder %s155, %s157
    %p164 = scmp.eq.s32.totalorder %s21, 1
    %p165 = por %p163, %p164
    %p166 = scmp.ne.s32.totalorder %s157, %s158
    %p167 = scmp.eq.s32.totalorder %s21, 0
    %p168 = por %p166, %p167
    %p169 = scmp.ne.s32.totalorder %s157, %s158
    %p170 = scmp.eq.s32.totalorder %s22, 1
    %p171 = por %p169, %p170
    %p173 = scmp.ne.s32.totalorder %s158, %s172
    %p174 = scmp.eq.s32.totalorder %s22, 0
    %p175 = por %p173, %p174
    %s177 = sadd.s32 %s176, 1
    %p180 = scmp.eq.s32.totalorder %s16, 1
    %p181 = scmp.ne.s32.totalorder %s176, %s178
    %p182 = scmp.eq.s32.totalorder %s16, 0
    %p183 = por %p181, %p182
    %p184 = scmp.ne.s32.totalorder %s176, %s178
    %p185 = scmp.eq.s32.totalorder %s21, 1
    %p186 = por %p184, %p185
    %p187 = scmp.ne.s32.totalorder %s178, %s179
    %p188 = scmp.eq.s32.totalorder %s21, 0
    %p189 = por %p187, %p188
    %p190 = scmp.ne.s32.totalorder %s178, %s179
    %p191 = scmp.eq.s32.totalorder %s22, 1
    %p192 = por %p190, %p191
    %p194 = scmp.ne.s32.totalorder %s179, %s193
    %p195 = scmp.eq.s32.totalorder %s22, 0
    %p196 = por %p194, %p195
    %s197 = ssub.s32 %s16, %s23
    %p198 = scmp.eq.s32.totalorder %s197, 0
    %s200 = sadd.s32 %s199, 1
    %s201 = scalar_select %p198, %s199, %s200
    %p204 = pneg %p198
    %p205 = scmp.eq.s32.totalorder %s16, 1
    %p206 = por %p204, %p205
    %p207 = scmp.ne.s32.totalorder %s199, %s202
    %p208 = scmp.eq.s32.totalorder %s16, 0
    %p209 = por %p207, %p208
    %p210 = scmp.ne.s32.totalorder %s199, %s202
    %p211 = scmp.eq.s32.totalorder %s21, 1
    %p212 = por %p210, %p211
    %p213 = scmp.ne.s32.totalorder %s202, %s203
    %p214 = scmp.eq.s32.totalorder %s21, 0
    %p215 = por %p213, %p214
    %p216 = scmp.ne.s32.totalorder %s202, %s203
    %p217 = scmp.eq.s32.totalorder %s22, 1
    %p218 = por %p216, %p217
    %p220 = scmp.ne.s32.totalorder %s203, %s219
    %p221 = scmp.eq.s32.totalorder %s22, 0
    %p222 = por %p220, %p221
    %p223 = scmp.le.s32.totalorder 1, %s16
    %p224 = scmp.lt.s32.totalorder %s16, 3
    %p225 = pnand %p223, %p224
    %p226 = pneg %p225
    // Predicated region
    $region9: #{pinn_forward.1} parent=5 // pred_check
      _
    $region10: #{pinn_forward.1} parent=5 // pred_check_branch
      %228 = sbr.rel (%p225) target = $region12
    $region11: #{pinn_forward.1} parent=5 // pred_region
      %s229 = ssub.s32 %s16, 1
      // Predicated region
      $region13: #{pinn_forward.1} parent=11 // pred_check
        %p230 = pneg %p63
      $region14: #{pinn_forward.1} parent=11 // pred_check_branch
        %232 = sbr.rel (%p230) target = $region16
      $region15: #{pinn_forward.1} parent=11 // pred_region
        _
      $region16: #{pinn_forward.1} parent=11 // pred_fallthru
        _
      // Predicated region
      $region17: #{pinn_forward.1} parent=11 // pred_check
        %p233 = pneg %p84
      $region18: #{pinn_forward.1} parent=11 // pred_check_branch
        %235 = sbr.rel (%p233) target = $region20
      $region19: #{pinn_forward.1} parent=11 // pred_region
        _
      $region20: #{pinn_forward.1} parent=11 // pred_fallthru
        _
      // Predicated region
      $region21: #{pinn_forward.1} parent=11 // pred_check
        %p236 = pneg %p105
      $region22: #{pinn_forward.1} parent=11 // pred_check_branch
        %238 = sbr.rel (%p236) target = $region24
      $region23: #{pinn_forward.1} parent=11 // pred_region
        _
      $region24: #{pinn_forward.1} parent=11 // pred_fallthru
        _
      // Predicated region
      $region25: #{pinn_forward.1} parent=11 // pred_check
        %p239 = pneg %p126
      $region26: #{pinn_forward.1} parent=11 // pred_check_branch
        %241 = sbr.rel (%p239) target = $region28
      $region27: #{pinn_forward.1} parent=11 // pred_region
        _
      $region28: #{pinn_forward.1} parent=11 // pred_fallthru
        _
      // Predicated region
      $region29: #{pinn_forward.1} parent=11 // pred_check
        %p242 = pneg %p147
      $region30: #{pinn_forward.1} parent=11 // pred_check_branch
        %244 = sbr.rel (%p242) target = $region32
      $region31: #{pinn_forward.1} parent=11 // pred_region
        _
      $region32: #{pinn_forward.1} parent=11 // pred_fallthru
        _
      // Predicated region
      $region33: #{pinn_forward.1} parent=11 // pred_check
        %p245 = pneg %p168
      $region34: #{pinn_forward.1} parent=11 // pred_check_branch
        %247 = sbr.rel (%p245) target = $region36
      $region35: #{pinn_forward.1} parent=11 // pred_region
        _
      $region36: #{pinn_forward.1} parent=11 // pred_fallthru
        _
      // Predicated region
      $region37: #{pinn_forward.1} parent=11 // pred_check
        %p248 = pneg %p189
      $region38: #{pinn_forward.1} parent=11 // pred_check_branch
        %250 = sbr.rel (%p248) target = $region40
      $region39: #{pinn_forward.1} parent=11 // pred_region
        _
      $region40: #{pinn_forward.1} parent=11 // pred_fallthru
        _
    $region12: #{pinn_forward.1} parent=5 // pred_fallthru
      _
    %p251 = scmp.lt.s32.totalorder %s16, 2
    // Predicated region
    $region41: #{pinn_forward.1} parent=5 // pred_check
      %p252 = pneg %p251
    $region42: #{pinn_forward.1} parent=5 // pred_check_branch
      %254 = sbr.rel (%p252) target = $region44
    $region43: #{pinn_forward.1} parent=5 // pred_region
      // Predicated region
      $region45: #{pinn_forward.1} parent=43 // pred_check
        %p255 = pneg %p36
      $region46: #{pinn_forward.1} parent=43 // pred_check_branch
        %257 = sbr.rel (%p255) target = $region48
      $region47: #{pinn_forward.1} parent=43 // pred_region
        %s258 = smul.u32 2, %s16
        %p259 = scmp.lt.s32.totalorder %s258, 3
        %s260 = scalar_select %p259, %s258, 3
        %s261 = smul.addr %s260, 2
        %s262 = scalar_lea.vmem %s0, %s261
        %s263 = smul.u32 2, %s16
      $region48: #{pinn_forward.1} parent=43 // pred_fallthru
        _
    $region44: #{pinn_forward.1} parent=5 // pred_fallthru
      _
    %p264 = scmp.le.s32.totalorder 1, %s16
    %p265 = scmp.lt.s32.totalorder %s16, 3
    %p266 = pnand %p264, %p265
    %p267 = pneg %p266
    // Predicated region
    $region49: #{pinn_forward.1} parent=5 // pred_check
      _
    $region50: #{pinn_forward.1} parent=5 // pred_check_branch
      %269 = sbr.rel (%p266) target = $region52
    $region51: #{pinn_forward.1} parent=5 // pred_region
      %s270 = ssub.s32 %s16, 1
      %s271 = smul.u32 2, %s21
      %p272 = scmp.lt.s32.totalorder %s271, 3
      %s273 = scalar_select %p272, %s271, 3
      %s274 = smul.addr %s273, 2
      %s275 = scalar_lea.vmem %s0, %s274
      %p276 = pneg %p42
      %p277 = pneg %p39
      %p278 = pneg %p63
      %p279 = pneg %p60
      %p280 = pneg %p84
      %p281 = pneg %p81
      %p282 = pneg %p105
      %p283 = pneg %p102
      %p284 = pneg %p126
      %p285 = pneg %p123
      %p286 = pneg %p147
      %p287 = pneg %p144
      %p288 = pneg %p168
      %p289 = pneg %p165
      %p290 = pneg %p189
      %p291 = pneg %p186
      %p292 = pneg %p215
      %p293 = pneg %p212
      %s294 = smul.u32 2, %s21
      %p295 = scmp.lt.s32.totalorder %s294, 3
      %s296 = scalar_select %p295, %s294, 3
      %s297 = scalar_lea.vmem %s8, %s296
      %s298 = smul.u32 2, %s21
      %p299 = scmp.lt.s32.totalorder %s298, 3
      %s300 = scalar_select %p299, %s298, 3
      %s301 = smul.addr %s300, 2
      %s302 = scalar_lea.vmem %s0, %s301
      %s303 = smul.u32 2, %s21
      %s304 = smul.u32 2, %s21
      %p305 = scmp.lt.s32.totalorder %s304, 3
      %s306 = scalar_select %p305, %s304, 3
      %s307 = scalar_lea.vmem %s8, %s306
      %s308 = smul.u32 2, %s21
      %v309 = vld [vmem:[%s302] ss:$2 sm:$0x3]
      %s310 = scalar_lea.vmem %s302, 1
      %v311 = vld [vmem:[%s310] ss:$2 sm:$0x3]
      %v312 = vld [vmem:[%s1] sm:$0xff]
      %v313 = vld [vmem:[%s1 + $0x8] sm:$0xff]
      %v314 = vld [vmem:[%s1 + $0x10] sm:$0xff]
      %v315 = vld [vmem:[%s1 + $0x18] sm:$0xff]
      %v316 = vld [vmem:[%s1 + $0x20] sm:$0xff]
      %v317 = vld [vmem:[%s1 + $0x28] sm:$0xff]
      %v318 = vld [vmem:[%s1 + $0x30] sm:$0xff]
      %v319 = vld [vmem:[%s1 + $0x38] sm:$0xff]
      %321 = vset.pattern.permute.xlu0 0
      %322 = vperm.xlu0 %321, %v312
      %v323 = vpop.permute.xlu0 %322
      %326 = vset.pattern.permute.xlu0 0
      %327 = vperm.xlu0 %326, %v313
      %v328 = vpop.permute.xlu0 %327
      %331 = vset.pattern.permute.xlu0 0
      %332 = vperm.xlu0 %331, %v314
      %v333 = vpop.permute.xlu0 %332
      %336 = vset.pattern.permute.xlu0 0
      %337 = vperm.xlu0 %336, %v315
      %v338 = vpop.permute.xlu0 %337
      %341 = vset.pattern.permute.xlu0 0
      %342 = vperm.xlu0 %341, %v316
      %v343 = vpop.permute.xlu0 %342
      %346 = vset.pattern.permute.xlu0 0
      %347 = vperm.xlu0 %346, %v317
      %v348 = vpop.permute.xlu0 %347
      %351 = vset.pattern.permute.xlu0 0
      %352 = vperm.xlu0 %351, %v318
      %v353 = vpop.permute.xlu0 %352
      %356 = vset.pattern.permute.xlu0 0
      %357 = vperm.xlu0 %356, %v319
      %v358 = vpop.permute.xlu0 %357
      %v361 = vperm.slane %v309, 0
      %v362 = vperm.slane %v309, 1
      %v365 = vmul.f32 %v323, %v361
      %v366 = vmul.f32 %v323, %v362
      %v367 = vmul.f32 %v328, %v361
      %v368 = vmul.f32 %v328, %v362
      %v369 = vmul.f32 %v333, %v361
      %v370 = vmul.f32 %v333, %v362
      %v371 = vmul.f32 %v338, %v361
      %v372 = vmul.f32 %v338, %v362
      %v373 = vmul.f32 %v343, %v361
      %v374 = vmul.f32 %v343, %v362
      %v375 = vmul.f32 %v348, %v361
      %v376 = vmul.f32 %v348, %v362
      %v377 = vmul.f32 %v353, %v361
      %v378 = vmul.f32 %v353, %v362
      %v379 = vmul.f32 %v358, %v361
      %v380 = vmul.f32 %v358, %v362
      %v381 = vld [vmem:[%s2] sm:$0xff]
      %v382 = vld [vmem:[%s2 + $0x8] sm:$0xff]
      %v383 = vld [vmem:[%s2 + $0x10] sm:$0xff]
      %v384 = vld [vmem:[%s2 + $0x18] sm:$0xff]
      %v385 = vld [vmem:[%s2 + $0x20] sm:$0xff]
      %v386 = vld [vmem:[%s2 + $0x28] sm:$0xff]
      %v387 = vld [vmem:[%s2 + $0x30] sm:$0xff]
      %v388 = vld [vmem:[%s2 + $0x38] sm:$0xff]
      %390 = vset.pattern.permute.xlu0 0
      %391 = vperm.xlu0 %390, %v381
      %v392 = vpop.permute.xlu0 %391
      %395 = vset.pattern.permute.xlu0 0
      %396 = vperm.xlu0 %395, %v382
      %v397 = vpop.permute.xlu0 %396
      %400 = vset.pattern.permute.xlu0 0
      %401 = vperm.xlu0 %400, %v383
      %v402 = vpop.permute.xlu0 %401
      %405 = vset.pattern.permute.xlu0 0
      %406 = vperm.xlu0 %405, %v384
      %v407 = vpop.permute.xlu0 %406
      %410 = vset.pattern.permute.xlu0 0
      %411 = vperm.xlu0 %410, %v385
      %v412 = vpop.permute.xlu0 %411
      %415 = vset.pattern.permute.xlu0 0
      %416 = vperm.xlu0 %415, %v386
      %v417 = vpop.permute.xlu0 %416
      %420 = vset.pattern.permute.xlu0 0
      %421 = vperm.xlu0 %420, %v387
      %v422 = vpop.permute.xlu0 %421
      %425 = vset.pattern.permute.xlu0 0
      %426 = vperm.xlu0 %425, %v388
      %v427 = vpop.permute.xlu0 %426
      %v430 = vperm.slane %v311, 0
      %v431 = vperm.slane %v311, 1
      %v434 = vmul.f32 %v392, %v430
      %v435 = vmul.f32 %v392, %v431
      %v436 = vmul.f32 %v397, %v430
      %v437 = vmul.f32 %v397, %v431
      %v438 = vmul.f32 %v402, %v430
      %v439 = vmul.f32 %v402, %v431
      %v440 = vmul.f32 %v407, %v430
      %v441 = vmul.f32 %v407, %v431
      %v442 = vmul.f32 %v412, %v430
      %v443 = vmul.f32 %v412, %v431
      %v444 = vmul.f32 %v417, %v430
      %v445 = vmul.f32 %v417, %v431
      %v446 = vmul.f32 %v422, %v430
      %v447 = vmul.f32 %v422, %v431
      %v448 = vmul.f32 %v427, %v430
      %v449 = vmul.f32 %v427, %v431
      %v450 = vadd.f32 %v365, %v434
      %v451 = vadd.f32 %v366, %v435
      %v452 = vadd.f32 %v367, %v436
      %v453 = vadd.f32 %v368, %v437
      %v454 = vadd.f32 %v369, %v438
      %v455 = vadd.f32 %v370, %v439
      %v456 = vadd.f32 %v371, %v440
      %v457 = vadd.f32 %v372, %v441
      %v458 = vadd.f32 %v373, %v442
      %v459 = vadd.f32 %v374, %v443
      %v460 = vadd.f32 %v375, %v444
      %v461 = vadd.f32 %v376, %v445
      %v462 = vadd.f32 %v377, %v446
      %v463 = vadd.f32 %v378, %v447
      %v464 = vadd.f32 %v379, %v448
      %v465 = vadd.f32 %v380, %v449
      %v466 = vld [vmem:[%s3] sm:$0xff]
      %v467 = vld [vmem:[%s3 + $0x8] sm:$0xff]
      %v468 = vld [vmem:[%s3 + $0x10] sm:$0xff]
      %v469 = vld [vmem:[%s3 + $0x18] sm:$0xff]
      %v470 = vld [vmem:[%s3 + $0x20] sm:$0xff]
      %v471 = vld [vmem:[%s3 + $0x28] sm:$0xff]
      %v472 = vld [vmem:[%s3 + $0x30] sm:$0xff]
      %v473 = vld [vmem:[%s3 + $0x38] sm:$0xff]
      %475 = vset.pattern.permute.xlu0 0
      %476 = vperm.xlu0 %475, %v466
      %v477 = vpop.permute.xlu0 %476
      %480 = vset.pattern.permute.xlu0 0
      %481 = vperm.xlu0 %480, %v467
      %v482 = vpop.permute.xlu0 %481
      %485 = vset.pattern.permute.xlu0 0
      %486 = vperm.xlu0 %485, %v468
      %v487 = vpop.permute.xlu0 %486
      %490 = vset.pattern.permute.xlu0 0
      %491 = vperm.xlu0 %490, %v469
      %v492 = vpop.permute.xlu0 %491
      %495 = vset.pattern.permute.xlu0 0
      %496 = vperm.xlu0 %495, %v470
      %v497 = vpop.permute.xlu0 %496
      %500 = vset.pattern.permute.xlu0 0
      %501 = vperm.xlu0 %500, %v471
      %v502 = vpop.permute.xlu0 %501
      %505 = vset.pattern.permute.xlu0 0
      %506 = vperm.xlu0 %505, %v472
      %v507 = vpop.permute.xlu0 %506
      %510 = vset.pattern.permute.xlu0 0
      %511 = vperm.xlu0 %510, %v473
      %v512 = vpop.permute.xlu0 %511
      %v514 = vadd.f32 %v450, %v477
      %v515 = vadd.f32 %v451, %v477
      %v516 = vadd.f32 %v452, %v482
      %v517 = vadd.f32 %v453, %v482
      %v518 = vadd.f32 %v454, %v487
      %v519 = vadd.f32 %v455, %v487
      %v520 = vadd.f32 %v456, %v492
      %v521 = vadd.f32 %v457, %v492
      %v522 = vadd.f32 %v458, %v497
      %v523 = vadd.f32 %v459, %v497
      %v524 = vadd.f32 %v460, %v502
      %v525 = vadd.f32 %v461, %v502
      %v526 = vadd.f32 %v462, %v507
      %v527 = vadd.f32 %v463, %v507
      %v528 = vadd.f32 %v464, %v512
      %v529 = vadd.f32 %v465, %v512
      %v530 = vtanh.pop %v514
      %v531 = vtanh.pop %v515
      %v532 = vtanh.pop %v516
      %v533 = vtanh.pop %v517
      %v534 = vtanh.pop %v518
      %v535 = vtanh.pop %v519
      %v536 = vtanh.pop %v520
      %v537 = vtanh.pop %v521
      %v538 = vtanh.pop %v522
      %v539 = vtanh.pop %v523
      %v540 = vtanh.pop %v524
      %v541 = vtanh.pop %v525
      %v542 = vtanh.pop %v526
      %v543 = vtanh.pop %v527
      %v544 = vtanh.pop %v528
      %v545 = vtanh.pop %v529
      %v546 = vld [vmem:[%s4] sm:$0xff]
      %v547 = vld [vmem:[%s4 + $0x8] sm:$0xff]
      %v548 = vld [vmem:[%s4 + $0x10] sm:$0xff]
      %v549 = vld [vmem:[%s4 + $0x18] sm:$0xff]
      %v550 = vld [vmem:[%s4 + $0x20] sm:$0xff]
      %v551 = vld [vmem:[%s4 + $0x28] sm:$0xff]
      %v552 = vld [vmem:[%s4 + $0x30] sm:$0xff]
      %v553 = vld [vmem:[%s4 + $0x38] sm:$0xff]
      %v554 = vld [vmem:[%s5] sm:$0xff]
      %v555 = vld [vmem:[%s5 + $0x8] sm:$0xff]
      %v556 = vld [vmem:[%s5 + $0x10] sm:$0xff]
      %v557 = vld [vmem:[%s5 + $0x18] sm:$0xff]
      %v558 = vld [vmem:[%s5 + $0x20] sm:$0xff]
      %v559 = vld [vmem:[%s5 + $0x28] sm:$0xff]
      %v560 = vld [vmem:[%s5 + $0x30] sm:$0xff]
      %v561 = vld [vmem:[%s5 + $0x38] sm:$0xff]
      %563 = vset.pattern.permute.xlu0 0
      %564 = vperm.xlu0 %563, %v554
      %v565 = vpop.permute.xlu0 %564
      %568 = vset.pattern.permute.xlu0 0
      %569 = vperm.xlu0 %568, %v555
      %v570 = vpop.permute.xlu0 %569
      %573 = vset.pattern.permute.xlu0 0
      %574 = vperm.xlu0 %573, %v556
      %v575 = vpop.permute.xlu0 %574
      %578 = vset.pattern.permute.xlu0 0
      %579 = vperm.xlu0 %578, %v557
      %v580 = vpop.permute.xlu0 %579
      %583 = vset.pattern.permute.xlu0 0
      %584 = vperm.xlu0 %583, %v558
      %v585 = vpop.permute.xlu0 %584
      %588 = vset.pattern.permute.xlu0 0
      %589 = vperm.xlu0 %588, %v559
      %v590 = vpop.permute.xlu0 %589
      %593 = vset.pattern.permute.xlu0 0
      %594 = vperm.xlu0 %593, %v560
      %v595 = vpop.permute.xlu0 %594
      %598 = vset.pattern.permute.xlu0 0
      %599 = vperm.xlu0 %598, %v561
      %v600 = vpop.permute.xlu0 %599
      %vm602 = vcmask 523264
      %v604 = vsel %vm602, %v546, 0
      %v607 = vsel %vm602, %v547, 0
      %v610 = vsel %vm602, %v548, 0
      %v613 = vsel %vm602, %v549, 0
      %v616 = vsel %vm602, %v550, 0
      %v619 = vsel %vm602, %v551, 0
      %v622 = vsel %vm602, %v552, 0
      %v625 = vsel %vm602, %v553, 0
      %627 = vmatpush.msra.mxu0 0.0
      %628 = vmatpush.msra.mxu0 0.0
      %629 = vmatpush.msra.mxu0 0.0
      %630 = vmatpush.msra.mxu0 0.0
      %631 = vmatpush.msra.mxu0 0.0
      %632 = vmatpush.msra.mxu0 0.0
      %633 = vmatpush.msra.mxu0 0.0
      %634 = vmatpush.msra.mxu0 0.0
      %635 = vmatpush.msra.mxu0 %v544
      %636 = vmatpush.msra.mxu0 %v542
      %637 = vmatpush.msra.mxu0 %v540
      %638 = vmatpush.msra.mxu0 %v538
      %639 = vmatpush.msra.mxu0 %v536
      %640 = vmatpush.msra.mxu0 %v534
      %641 = vmatpush.msra.mxu0 %v532
      %642 = vmatpush.msra.mxu0 %v530
      %643 = vmatmul.f32.gmra.mxu0 %v604
      %v644 = vpop.f32.mrf.mxu0
      %v645 = vadd.f32 %v565, %v644
      %646 = vmatmul.f32.gmra.mxu0 %v607
      %v647 = vpop.f32.mrf.mxu0
      %v648 = vadd.f32 %v570, %v647
      %649 = vmatmul.f32.gmra.mxu0 %v610
      %v650 = vpop.f32.mrf.mxu0
      %v651 = vadd.f32 %v575, %v650
      %652 = vmatmul.f32.gmra.mxu0 %v613
      %v653 = vpop.f32.mrf.mxu0
      %v654 = vadd.f32 %v580, %v653
      %655 = vmatmul.f32.gmra.mxu0 %v616
      %v656 = vpop.f32.mrf.mxu0
      %v657 = vadd.f32 %v585, %v656
      %658 = vmatmul.f32.gmra.mxu0 %v619
      %v659 = vpop.f32.mrf.mxu0
      %v660 = vadd.f32 %v590, %v659
      %661 = vmatmul.f32.gmra.mxu0 %v622
      %v662 = vpop.f32.mrf.mxu0
      %v663 = vadd.f32 %v595, %v662
      %664 = vmatmul.f32.gmra.mxu0 %v625
      %v665 = vpop.f32.mrf.mxu0
      %v666 = vadd.f32 %v600, %v665
      %667 = vdwg.mxu0
      %668 = vmatpush.msra.mxu0 0.0
      %669 = vmatpush.msra.mxu0 0.0
      %670 = vmatpush.msra.mxu0 0.0
      %671 = vmatpush.msra.mxu0 0.0
      %672 = vmatpush.msra.mxu0 0.0
      %673 = vmatpush.msra.mxu0 0.0
      %674 = vmatpush.msra.mxu0 0.0
      %675 = vmatpush.msra.mxu0 0.0
      %676 = vmatpush.msra.mxu0 %v545
      %677 = vmatpush.msra.mxu0 %v543
      %678 = vmatpush.msra.mxu0 %v541
      %679 = vmatpush.msra.mxu0 %v539
      %680 = vmatpush.msra.mxu0 %v537
      %681 = vmatpush.msra.mxu0 %v535
      %682 = vmatpush.msra.mxu0 %v533
      %683 = vmatpush.msra.mxu0 %v531
      %684 = vmatmul.f32.gmra.mxu0 %v604
      %v685 = vpop.f32.mrf.mxu0
      %v686 = vadd.f32 %v565, %v685
      %687 = vmatmul.f32.gmra.mxu0 %v607
      %v688 = vpop.f32.mrf.mxu0
      %v689 = vadd.f32 %v570, %v688
      %690 = vmatmul.f32.gmra.mxu0 %v610
      %v691 = vpop.f32.mrf.mxu0
      %v692 = vadd.f32 %v575, %v691
      %693 = vmatmul.f32.gmra.mxu0 %v613
      %v694 = vpop.f32.mrf.mxu0
      %v695 = vadd.f32 %v580, %v694
      %696 = vmatmul.f32.gmra.mxu0 %v616
      %v697 = vpop.f32.mrf.mxu0
      %v698 = vadd.f32 %v585, %v697
      %699 = vmatmul.f32.gmra.mxu0 %v619
      %v700 = vpop.f32.mrf.mxu0
      %v701 = vadd.f32 %v590, %v700
      %702 = vmatmul.f32.gmra.mxu0 %v622
      %v703 = vpop.f32.mrf.mxu0
      %v704 = vadd.f32 %v595, %v703
      %705 = vmatmul.f32.gmra.mxu0 %v625
      %v706 = vpop.f32.mrf.mxu0
      %v707 = vadd.f32 %v600, %v706
      %708 = vdwg.mxu0
      %v709 = vtanh.pop %v645
      %v710 = vtanh.pop %v686
      %v711 = vtanh.pop %v648
      %v712 = vtanh.pop %v689
      %v713 = vtanh.pop %v651
      %v714 = vtanh.pop %v692
      %v715 = vtanh.pop %v654
      %v716 = vtanh.pop %v695
      %v717 = vtanh.pop %v657
      %v718 = vtanh.pop %v698
      %v719 = vtanh.pop %v660
      %v720 = vtanh.pop %v701
      %v721 = vtanh.pop %v663
      %v722 = vtanh.pop %v704
      %v723 = vtanh.pop %v666
      %v724 = vtanh.pop %v707
      %v725 = vld [vmem:[%s6] sm:$0x1]
      %v726 = vld [vmem:[#allocation2] sm:$0x1]
      %728 = vset.pattern.permute.xlu0 0
      %729 = vperm.xlu0 %728, %v726
      %v730 = vpop.permute.xlu0 %729
      %v732 = vperm.slane %v730, 0
      %v734 = vsel %vm602, %v725, 0
      %736 = vmatpush.msra.mxu0 0.0
      %737 = vmatpush.msra.mxu0 0.0
      %738 = vmatpush.msra.mxu0 0.0
      %739 = vmatpush.msra.mxu0 0.0
      %740 = vmatpush.msra.mxu0 0.0
      %741 = vmatpush.msra.mxu0 0.0
      %742 = vmatpush.msra.mxu0 0.0
      %743 = vmatpush.msra.mxu0 0.0
      %744 = vmatpush.msra.mxu0 %v723
      %745 = vmatpush.msra.mxu0 %v721
      %746 = vmatpush.msra.mxu0 %v719
      %747 = vmatpush.msra.mxu0 %v717
      %748 = vmatpush.msra.mxu0 %v715
      %749 = vmatpush.msra.mxu0 %v713
      %750 = vmatpush.msra.mxu0 %v711
      %751 = vmatpush.msra.mxu0 %v709
      %752 = vmatmul.f32.gmra.mxu0 %v734
      %v753 = vpop.f32.mrf.mxu0
      %v754 = vadd.f32 %v732, %v753
      %755 = vdwg.mxu0
      %756 = vmatpush.msra.mxu0 0.0
      %757 = vmatpush.msra.mxu0 0.0
      %758 = vmatpush.msra.mxu0 0.0
      %759 = vmatpush.msra.mxu0 0.0
      %760 = vmatpush.msra.mxu0 0.0
      %761 = vmatpush.msra.mxu0 0.0
      %762 = vmatpush.msra.mxu0 0.0
      %763 = vmatpush.msra.mxu0 0.0
      %764 = vmatpush.msra.mxu0 %v724
      %765 = vmatpush.msra.mxu0 %v722
      %766 = vmatpush.msra.mxu0 %v720
      %767 = vmatpush.msra.mxu0 %v718
      %768 = vmatpush.msra.mxu0 %v716
      %769 = vmatpush.msra.mxu0 %v714
      %770 = vmatpush.msra.mxu0 %v712
      %771 = vmatpush.msra.mxu0 %v710
      %772 = vmatmul.f32.gmra.mxu0 %v734
      %v773 = vpop.f32.mrf.mxu0
      %v774 = vadd.f32 %v732, %v773
      %775 = vdwg.mxu0
      %v778 = vrot.slane %v774, 7
      %vm779 = vcmask 1040384
      %v780 = vsel %vm779, %v754, %v778
      %v782 = vlaneseq
      %vm783 = vcmp.ge.s32.totalorder %v782, 0
      %vm784 = vcmp.lt.s32.totalorder %v782, 256
      %vm785 = vmand %vm783, %vm784
      %786 = vst.msk [vmem:[%s307] sm:$0x3] %vm785, %v780
      %s787 = smul.u32 2, %s21
      %p788 = scmp.lt.s32.totalorder %s787, 3
      %s789 = scalar_select %p788, %s787, 3
      %s790 = scalar_lea.vmem %s8, %s789
      // Predicated region
      $region53: #{pinn_forward.1} parent=51 // pred_check
        %p791 = pneg %p212
      $region54: #{pinn_forward.1} parent=51 // pred_check_branch
        %793 = sbr.rel (%p791) target = $region56
      $region55: #{pinn_forward.1} parent=51 // pred_region
        %s794 = smul.u32 2, %s21
      $region56: #{pinn_forward.1} parent=51 // pred_fallthru
        _
    $region52: #{pinn_forward.1} parent=5 // pred_fallthru
      _
    %p795 = scmp.le.s32.totalorder 2, %s16
    // Predicated region
    $region57: #{pinn_forward.1} parent=5 // pred_check
      %p796 = pneg %p795
    $region58: #{pinn_forward.1} parent=5 // pred_check_branch
      %798 = sbr.rel (%p796) target = $region60
    $region59: #{pinn_forward.1} parent=5 // pred_region
      %s799 = ssub.s32 %s16, 2
      // Predicated region
      $region61: #{pinn_forward.1} parent=59 // pred_check
        %p800 = pneg %p218
      $region62: #{pinn_forward.1} parent=59 // pred_check_branch
        %802 = sbr.rel (%p800) target = $region64
      $region63: #{pinn_forward.1} parent=59 // pred_region
        %s803 = smul.u32 2, %s22
        %p804 = scmp.lt.s32.totalorder %s803, 3
        %s805 = scalar_select %p804, %s803, 3
        %s806 = scalar_lea.vmem %s8, %s805
      $region64: #{pinn_forward.1} parent=59 // pred_fallthru
        _
    $region60: #{pinn_forward.1} parent=5 // pred_fallthru
      _
  $region6: #{pinn_forward.1} parent=0 // loop_footer
    %s20 = sadd.s32 1, %s16
  $region7: #{pinn_forward.1} parent=0 // loop_footer_branch
    %15 = sbr.rel target = $region3
  $region8: #{pinn_forward.1} parent=0 // loop_exit
    _

</llo_original>
